<compile_context>
chip_gen: v5e
topology: v5e:2x2
jax: 0.10.0
libtpu: 0.0.40
codegen_flags: <defaults>
</compile_context>

<pallas_src>
import jax
import jax.numpy as jnp
from jax.experimental import pallas as pl
from jax.experimental.pallas import tpu as pltpu


def _l2_penalty_flat_kernel(x_ref, c_ref, ind_ref, o_ref):
    # x_ref:   (TB, QD)   lane-dense batch tile
    # c_ref:   (1, QD)    flattened reference point (resident across the grid)
    # ind_ref: (QD, Q)    block indicator: column q sums lanes q*D .. (q+1)*D-1
    # o_ref:   (1, TB)    lane-dense output tile (batch on the lane axis)
    diff = (x_ref[...] - c_ref[...]).astype(jnp.float32)          # (TB, QD)
    sq = diff * diff                                              # (TB, QD)
    # Per-q sum of squares via the MXU (free slot on a DMA-bound kernel).
    sq_dist = jnp.dot(sq, ind_ref[...],
                      preferred_element_type=jnp.float32)         # (TB, Q)
    o_ref[...] = jnp.max(sq_dist, axis=-1)[None, :].astype(o_ref.dtype)


def _l2_penalty_3d_kernel(x_ref, c_ref, o_ref):
    # Used only when D % 128 == 0 (rows are already lane-dense).
    # x_ref: (TB, Q, D), c_ref: (1, D), o_ref: (1, TB)
    diff = (x_ref[...] - c_ref[...][None, :, :]).astype(jnp.float32)
    sq_dist = jnp.sum(diff * diff, axis=-1)                       # (TB, Q)
    o_ref[...] = jnp.max(sq_dist, axis=-1)[None, :].astype(o_ref.dtype)


def _pick_batch_tile(B, row_bytes, target_bytes):
    """Batch-tile size from the *padded* per-row VMEM footprint."""
    tb = max(1, int(target_bytes) // int(row_bytes))
    if tb >= B:
        return B                          # single tile; full-dim blocks are always legal
    tb = min(tb, -(-B // 2))              # >= 2 grid tiles (balance the 2 TCs on v7x)
    tb = max(128, (tb // 128) * 128)      # lane-aligned output stores (unmasked vst)
    # TODO(synk): for enormous Q*dim rows a 128-row tile may exceed the VMEM
    # budget; would need a sublane-layout output fallback in that regime.
    return min(tb, B)


def l2_penalty(x, init_point, *, target_tile_bytes=4 * 1024 * 1024):
    """x: (batch_shape..., q, dim); init_point: (1, dim) or (dim,) -> (batch_shape...)."""
    batch_shape = x.shape[:-2]
    Q, D = x.shape[-2], x.shape[-1]
    B = 1
    for s in batch_shape:
        B *= int(s)
    x3 = x.reshape(B, Q, D)

    itemsize = jnp.dtype(x.dtype).itemsize
    out_dtype = x.dtype
    c = jnp.asarray(init_point).reshape(1, D).astype(x.dtype)

    use_flat = (D % 128) != 0
    if use_flat:
        QD = Q * D
        qd_pad = ((QD + 127) // 128) * 128          # lane-padded row width in VMEM
        row_bytes = qd_pad * itemsize
        x_in = x3.reshape(B, QD)                    # free row-major reshape
        c_flat = jnp.broadcast_to(c, (Q, D)).reshape(1, QD)
        # (QD, Q) block indicator, f32, VMEM-resident across the grid.
        ind = (jnp.arange(QD, dtype=jnp.int32)[:, None] // D
               == jnp.arange(Q, dtype=jnp.int32)[None, :]).astype(jnp.float32)
    else:
        q_pad = ((Q + 7) // 8) * 8                  # sublane padding of the (Q, D) tile
        row_bytes = q_pad * D * itemsize
        x_in = x3

    TB = _pick_batch_tile(B, row_bytes, target_tile_bytes)
    G = pl.cdiv(B, TB)                              # last block may be partial (no jnp.pad)

    compiler_params = pltpu.CompilerParams(
        dimension_semantics=("parallel",),          # batch tiles shard across TCs
        vmem_limit_bytes=48 * 1024 * 1024,          # headroom on v7x's 64 MiB/TC
    )

    if use_flat:
        out = pl.pallas_call(
            _l2_penalty_flat_kernel,
            out_shape=jax.ShapeDtypeStruct((1, B), out_dtype),
            grid=(G,),
            in_specs=[
                pl.BlockSpec((TB, QD), lambda i: (i, 0)),
                pl.BlockSpec((1, QD), lambda i: (0, 0)),   # constant -> stays resident
                pl.BlockSpec((QD, Q), lambda i: (0, 0)),   # constant -> stays resident
            ],
            out_specs=pl.BlockSpec((1, TB), lambda i: (0, i)),
            compiler_params=compiler_params,
        )(x_in, c_flat, ind)
    else:
        out = pl.pallas_call(
            _l2_penalty_3d_kernel,
            out_shape=jax.ShapeDtypeStruct((1, B), out_dtype),
            grid=(G,),
            in_specs=[
                pl.BlockSpec((TB, Q, D), lambda i: (i, 0, 0)),
                pl.BlockSpec((1, D), lambda i: (0, 0)),
            ],
            out_specs=pl.BlockSpec((1, TB), lambda i: (0, i)),
            compiler_params=compiler_params,
        )(x_in, c)

    return out.reshape(batch_shape)


def _reference(x, init_point):
    c = jnp.asarray(init_point, dtype=jnp.float32).reshape(1, -1)
    xf = x.astype(jnp.float32)
    d = jnp.linalg.norm(xf - c, axis=-1)
    return jnp.max(d, axis=-1) ** 2


if __name__ == "__main__":
    key = jax.random.PRNGKey(0)
    k1, k2, k3, k4, k5, k6 = jax.random.split(key, 6)

    # 1) Small shape consistent with the module: batch=4, q=8, dim=32 (flat path, G=1).
    B, Q, D = 4, 8, 32
    x = jax.random.normal(k1, (B, Q, D), dtype=jnp.float32)
    init_point = jax.random.normal(k2, (1, D), dtype=jnp.float32)
    out = jax.block_until_ready(l2_penalty(x, init_point))
    ref = _reference(x, init_point)
    assert out.shape == (B,)
    assert jnp.allclose(out, ref, rtol=1e-5, atol=1e-5), (out, ref)

    # 2) Ragged batch with forced tiling: TB=128, G=3, partial last block (no jnp.pad).
    B2 = 300
    x2 = jax.random.normal(k3, (B2, Q, D), dtype=jnp.float32)
    out2 = jax.block_until_ready(
        l2_penalty(x2, init_point, target_tile_bytes=128 * 256 * 4)
    )
    ref2 = _reference(x2, init_point)
    assert out2.shape == (B2,)
    assert jnp.allclose(out2, ref2, rtol=1e-5, atol=1e-5), (out2, ref2)

    # 3) Lane-aligned dim (D=128) exercises the 3D path.
    x3 = jax.random.normal(k4, (16, Q, 128), dtype=jnp.float32)
    init3 = jax.random.normal(k5, (1, 128), dtype=jnp.float32)
    out3 = jax.block_until_ready(l2_penalty(x3, init3))
    ref3 = _reference(x3, init3)
    assert out3.shape == (16,)
    assert jnp.allclose(out3, ref3, rtol=1e-5, atol=1e-5), (out3, ref3)

    # 4) bf16 inputs: halved HBM traffic, f32 accumulation inside the kernel.
    x4 = jax.random.normal(k6, (37, Q, D), dtype=jnp.bfloat16)
    init4 = init_point.astype(jnp.bfloat16)
    out4 = jax.block_until_ready(l2_penalty(x4, init4))
    ref4 = _reference(x4, init4)
    assert out4.shape == (37,)
    assert jnp.allclose(out4.astype(jnp.float32), ref4, rtol=5e-2, atol=5e-2), (out4, ref4)

    # 5) Multi-dimensional batch_shape.
    x5 = jax.random.normal(k3, (2, 3, Q, D), dtype=jnp.float32)
    out5 = jax.block_until_ready(l2_penalty(x5, init_point))
    ref5 = _reference(x5, init_point)
    assert out5.shape == (2, 3)
    assert jnp.allclose(out5, ref5, rtol=1e-5, atol=1e-5), (out5, ref5)

    print("KERNEL_OK")
</pallas_src>

<mosaic_0001>
module attributes {stable_mosaic.version = 11 : i64} {
  func.func @_l2_penalty_flat_kernel(%arg0: i32, %arg1: memref<4x256xf32, #tpu.memory_space<vmem>>, %arg2: memref<1x256xf32, #tpu.memory_space<vmem>>, %arg3: memref<256x8xf32, #tpu.memory_space<vmem>>, %arg4: memref<1x4xf32, #tpu.memory_space<vmem>>) attributes {dimension_semantics = [#tpu.dimension_semantics<parallel>], iteration_bounds = array<i64: 1>, scalar_prefetch = 0 : i64, scratch_operands = 0 : i64, tpu.core_type = #tpu.core_type<tc>, window_params = [{transform_indices = @transform_0, window_bounds = array<i64: 4, 256>}, {pipeline_mode = #tpu.pipeline_mode<synchronous>, transform_indices = @transform_1, window_bounds = array<i64: 1, 256>}, {pipeline_mode = #tpu.pipeline_mode<synchronous>, transform_indices = @transform_2, window_bounds = array<i64: 256, 8>}, {transform_indices = @transform_3, window_bounds = array<i64: 1, 4>}]} {
    %c0 = arith.constant 0 : index
    %c0_0 = arith.constant 0 : index
    %0 = vector.load %arg1[%c0, %c0_0] : memref<4x256xf32, #tpu.memory_space<vmem>>, vector<4x256xf32>
    %c0_1 = arith.constant 0 : index
    %c0_2 = arith.constant 0 : index
    %1 = vector.load %arg2[%c0_1, %c0_2] : memref<1x256xf32, #tpu.memory_space<vmem>>, vector<1x256xf32>
    %2 = vector.broadcast %1 : vector<1x256xf32> to vector<4x256xf32>
    %3 = arith.subf %0, %2 : vector<4x256xf32>
    %4 = arith.mulf %3, %3 : vector<4x256xf32>
    %c0_3 = arith.constant 0 : index
    %c0_4 = arith.constant 0 : index
    %5 = vector.load %arg3[%c0_3, %c0_4] : memref<256x8xf32, #tpu.memory_space<vmem>>, vector<256x8xf32>
    %cst = arith.constant dense<0.000000e+00> : vector<4x8xf32>
    %6 = tpu.matmul %4, %5, %cst {dimension_numbers = #tpu.dot_dimension_numbers<[1], [0], [0], [1], [0, 0, 1, 1], [], []>} : vector<4x256xf32>, vector<256x8xf32>, vector<4x8xf32> -> vector<4x8xf32>
    %cst_5 = arith.constant dense<0xFF800000> : vector<4xf32>
    %7 = vector.multi_reduction <maximumf>, %6, %cst_5 [1] : vector<4x8xf32> to vector<4xf32>
    %8 = vector.shape_cast %7 : vector<4xf32> to vector<1x4xf32>
    %c0_6 = arith.constant 0 : index
    %c0_7 = arith.constant 0 : index
    %9 = vector.load %arg4[%c0_6, %c0_7] : memref<1x4xf32, #tpu.memory_space<vmem>>, vector<1x4xf32>
    tpu.vector_store %arg4[%c0_6, %c0_7], %8 {strides = array<i32>} : memref<1x4xf32, #tpu.memory_space<vmem>>, vector<1x4xf32>,
    return
  }
  func.func @transform_0(%arg0: i32) -> (i32, i32) {
    %c0_i32 = arith.constant 0 : i32
    %c0_i32_0 = arith.constant 0 : i32
    return %arg0, %c0_i32 : i32, i32
  }
  func.func @transform_1(%arg0: i32) -> (i32, i32) {
    %c0_i32 = arith.constant 0 : i32
    %c0_i32_0 = arith.constant 0 : i32
    %c0_i32_1 = arith.constant 0 : i32
    return %c0_i32, %c0_i32_0 : i32, i32
  }
  func.func @transform_2(%arg0: i32) -> (i32, i32) {
    %c0_i32 = arith.constant 0 : i32
    %c0_i32_0 = arith.constant 0 : i32
    %c0_i32_1 = arith.constant 0 : i32
    return %c0_i32, %c0_i32_0 : i32, i32
  }
  func.func @transform_3(%arg0: i32) -> (i32, i32) {
    %c0_i32 = arith.constant 0 : i32
    %c0_i32_0 = arith.constant 0 : i32
    return %c0_i32, %arg0 : i32, i32
  }
}

</mosaic_0001>

<llo_original>
// kernel: tpu_custom_call.1
$region0: #{tpu_custom_call.1}
  #allocation0 [shape = 'u32[]', space=smem, size = 0x4, offset = 0x4, fixed_abs, tag = 'smem constant byte address 0x4 - core index']
  #allocation1 [shape = 'u32[72,128]{1,0:T(1,128)}', space=vmem, size = 0x9000, scoped, tag = 'internal scratch']
  %s0 = inlined_call_operand.vmem [shape: f32[4,256], index: 0, kind: input, shape index: {}]
  %s1 = inlined_call_operand.vmem [shape: f32[1,256], index: 1, kind: input, shape index: {}]
  %s2 = inlined_call_operand.vmem [shape: f32[256,8], index: 2, kind: input, shape index: {}]
  %s3 = inlined_call_operand.hbm [shape: f32[1,4], index: 3, kind: output, shape index: {}]
  %s4 = sld [smem:[#allocation0]]
  $region22: #{tpu_custom_call.1} parent=0
    _
  %s6 = ssub.s32 1, %s4
  %s7 = scalar_select 0, %s6, %s4
  $region1: #{tpu_custom_call.1} parent=0
    #allocation2 [shape = 'u8[512]{0}', space=vmem, size = 0x400, scoped, tag = 'output window, operand 0, single buffered']
    #allocation3 [shape = 's32[1]{0}', space=sflag, size = 0x4, scoped, tag = 'scoped memory for tpu_custom_call.1']
    %8 = vsyncpa [#allocation3], 0
    // Predicated region
    $region2: #{tpu_custom_call.1} parent=1 // pred_check
      _
    $region3: #{tpu_custom_call.1} parent=1 // pred_check_branch
      %10 = sbr.rel (0) target = $region5
    $region4: #{tpu_custom_call.1} parent=1 // pred_region
      _
    $region5: #{tpu_custom_call.1} parent=1 // pred_fallthru
      _
    // Predicated region
    $region6: #{tpu_custom_call.1} parent=1 // pred_check
      _
    $region7: #{tpu_custom_call.1} parent=1 // pred_check_branch
      %12 = sbr.rel (0) target = $region9
    $region8: #{tpu_custom_call.1} parent=1 // pred_region
      _
    $region9: #{tpu_custom_call.1} parent=1 // pred_fallthru
      _
    // Predicated region
    $region10: #{tpu_custom_call.1} parent=1 // pred_check
      _
    $region11: #{tpu_custom_call.1} parent=1 // pred_check_branch
      %14 = sbr.rel (0) target = $region13
    $region12: #{tpu_custom_call.1} parent=1 // pred_region
      _
    $region13: #{tpu_custom_call.1} parent=1 // pred_fallthru
      _
    %v15 = vld [vmem:[%s0] sm:$0xff]
    %v16 = vld [vmem:[%s1] sm:$0x3]
    %v18 = vperm.slane %v16, 0
    %v19 = vperm.slane %v16, 1
    %v20 = vrot.slane %v19, 4
    %vm21 = vcmask 1043456
    %v22 = vsel %vm21, %v18, %v20
    %v24 = vsub.f32 %v15, %v22
    %v25 = vmul.f32 %v24, %v24
    %v26 = vld [vmem:[%s2] sm:$0xff]
    %v27 = vld [vmem:[%s2 + $0x8] sm:$0xff]
    %v28 = vld [vmem:[%s2 + $0x10] sm:$0xff]
    %v29 = vld [vmem:[%s2 + $0x18] sm:$0xff]
    %v30 = vld [vmem:[%s2 + $0x20] sm:$0xff]
    %v31 = vld [vmem:[%s2 + $0x28] sm:$0xff]
    %v32 = vld [vmem:[%s2 + $0x30] sm:$0xff]
    %v33 = vld [vmem:[%s2 + $0x38] sm:$0xff]
    %v34 = vld [vmem:[%s2 + $0x40] sm:$0xff]
    %v35 = vld [vmem:[%s2 + $0x48] sm:$0xff]
    %v36 = vld [vmem:[%s2 + $0x50] sm:$0xff]
    %v37 = vld [vmem:[%s2 + $0x58] sm:$0xff]
    %v38 = vld [vmem:[%s2 + $0x60] sm:$0xff]
    %v39 = vld [vmem:[%s2 + $0x68] sm:$0xff]
    %v40 = vld [vmem:[%s2 + $0x70] sm:$0xff]
    %v41 = vld [vmem:[%s2 + $0x78] sm:$0xff]
    %v42 = vld [vmem:[%s2 + $0x80] sm:$0xff]
    %v43 = vld [vmem:[%s2 + $0x88] sm:$0xff]
    %v44 = vld [vmem:[%s2 + $0x90] sm:$0xff]
    %v45 = vld [vmem:[%s2 + $0x98] sm:$0xff]
    %v46 = vld [vmem:[%s2 + $0xa0] sm:$0xff]
    %v47 = vld [vmem:[%s2 + $0xa8] sm:$0xff]
    %v48 = vld [vmem:[%s2 + $0xb0] sm:$0xff]
    %v49 = vld [vmem:[%s2 + $0xb8] sm:$0xff]
    %v50 = vld [vmem:[%s2 + $0xc0] sm:$0xff]
    %v51 = vld [vmem:[%s2 + $0xc8] sm:$0xff]
    %v52 = vld [vmem:[%s2 + $0xd0] sm:$0xff]
    %v53 = vld [vmem:[%s2 + $0xd8] sm:$0xff]
    %v54 = vld [vmem:[%s2 + $0xe0] sm:$0xff]
    %v55 = vld [vmem:[%s2 + $0xe8] sm:$0xff]
    %v56 = vld [vmem:[%s2 + $0xf0] sm:$0xff]
    %v57 = vld [vmem:[%s2 + $0xf8] sm:$0xff]
    %59 = vst [vmem:[#allocation1] ss:$2 sm:$0xff] %v25
    %v60 = vld.sshfl [vmem:[#allocation1] sm:$0xff pattern:$0x75316420]
    %v61 = vld.sshfl [vmem:[#allocation1 + $0x8] sm:$0xff pattern:$0x75316420]
    %64 = vmatpush.msra.mxu0 %v41
    %65 = vmatpush.msra.mxu0 %v40
    %66 = vmatpush.msra.mxu0 %v39
    %67 = vmatpush.msra.mxu0 %v38
    %68 = vmatpush.msra.mxu0 %v37
    %69 = vmatpush.msra.mxu0 %v36
    %70 = vmatpush.msra.mxu0 %v35
    %71 = vmatpush.msra.mxu0 %v34
    %72 = vmatpush.msra.mxu0 %v33
    %73 = vmatpush.msra.mxu0 %v32
    %74 = vmatpush.msra.mxu0 %v31
    %75 = vmatpush.msra.mxu0 %v30
    %76 = vmatpush.msra.mxu0 %v29
    %77 = vmatpush.msra.mxu0 %v28
    %78 = vmatpush.msra.mxu0 %v27
    %79 = vmatpush.msra.mxu0 %v26
    %80 = vmatmul.f32.gmra.mxu0 %v60
    %v81 = vpop.f32.mrf.mxu0
    %v82 = vadd.f32 0.0, %v81
    %83 = vdwg.mxu0
    %84 = vmatpush.msra.mxu0 %v57
    %85 = vmatpush.msra.mxu0 %v56
    %86 = vmatpush.msra.mxu0 %v55
    %87 = vmatpush.msra.mxu0 %v54
    %88 = vmatpush.msra.mxu0 %v53
    %89 = vmatpush.msra.mxu0 %v52
    %90 = vmatpush.msra.mxu0 %v51
    %91 = vmatpush.msra.mxu0 %v50
    %92 = vmatpush.msra.mxu0 %v49
    %93 = vmatpush.msra.mxu0 %v48
    %94 = vmatpush.msra.mxu0 %v47
    %95 = vmatpush.msra.mxu0 %v46
    %96 = vmatpush.msra.mxu0 %v45
    %97 = vmatpush.msra.mxu0 %v44
    %98 = vmatpush.msra.mxu0 %v43
    %99 = vmatpush.msra.mxu0 %v42
    %100 = vmatmul.f32.gmra.mxu0 %v61
    %v101 = vpop.f32.mrf.mxu0
    %v102 = vadd.f32 %v82, %v101
    %103 = vdwg.mxu0
    %vm104 = vcmask 60416
    %v105 = vsel %vm104, %v102, -inf
    %106 = vmax.xlane.f32.xlu0 %v105
    %v107 = vpop.xlane.xlu0 %106
    %v109 = vlaneseq
    %v110 = vand.u32 %v109, 127
    %v111 = vperm.slane %v107, %v110
    %vm113 = vcmask 24576
    %114 = vst.msk [vmem:[#allocation2] sm:$0x1] %vm113, %v111
    // Predicated region
    $region14: #{tpu_custom_call.1} parent=1 // pred_check
      _
    $region15: #{tpu_custom_call.1} parent=1 // pred_check_branch
      %116 = sbr.rel (0) target = $region17
    $region16: #{tpu_custom_call.1} parent=1 // pred_region
      %118 = vsyncadd [#allocation3], 0
      %s120 = sshll.u32 [#allocation2], 4
      %s121 = int_to_ptr.vmem [resolvable:$true] %s120
      %s122 = sshll.u32 %s3, 4
      %s123 = int_to_ptr.hbm [resolvable:$true] %s122
      %125 = dma.vmem_to_hbm [thread:$0]  %s121, 16, %s123, [#allocation3]
    $region17: #{tpu_custom_call.1} parent=1 // pred_fallthru
      _
    // Predicated region
    $region18: #{tpu_custom_call.1} parent=1 // pred_check
      _
    $region19: #{tpu_custom_call.1} parent=1 // pred_check_branch
      %127 = sbr.rel (0) target = $region21
    $region20: #{tpu_custom_call.1} parent=1 // pred_region
      %129 = dma.done [#allocation3], 16
    $region21: #{tpu_custom_call.1} parent=1 // pred_fallthru
      _
    %130 = vsyncpa [#allocation3], 1

</llo_original>
